<compile_context>
chip_gen: v5e
topology: v5e:2x2
jax: 0.10.0
libtpu: 0.0.40
codegen_flags: <defaults>
</compile_context>

<pallas_src>
import jax
import jax.numpy as jnp
from jax.experimental import pallas as pl
from jax.experimental.pallas import tpu as pltpu


def _round_up(n, m):
    return ((n + m - 1) // m) * m


def attacker_kernel(x_ref, w1_ref, b1_ref, w2_ref, b2_ref, w3t_ref, b3_ref, o_ref):
    """One batch tile of the MLP.

    x_ref:   (TB, d_in)    activations (f32 or bf16)
    w1_ref:  (d_in, d_h1)  fc1 weight, (in, out) layout (f32 or bf16)
    b1_ref:  (1, d_h1)     fc1 bias (f32)
    w2_ref:  (d_h1, d_h2)  fc2 weight (f32 or bf16)
    b2_ref:  (1, d_h2)     fc2 bias (f32)
    w3t_ref: (2, d_h2)     fc3 weight in PyTorch (out, in) layout (f32)
    b3_ref:  (1, 2)        fc3 bias (f32)
    o_ref:   (TB, 2)       softmax probabilities (f32)
    """
    mm_dtype = w1_ref.dtype  # bf16 on the v6e/v7x fast path, f32 otherwise

    # fc1 + relu (MXU, f32 accumulation; bias/relu on the VPU in f32)
    h1 = jnp.dot(x_ref[...], w1_ref[...], preferred_element_type=jnp.float32)
    h1 = jnp.maximum(h1 + b1_ref[...], 0.0)

    # fc2 + relu
    h2 = jnp.dot(h1.astype(mm_dtype), w2_ref[...], preferred_element_type=jnp.float32)
    h2 = jnp.maximum(h2 + b2_ref[...], 0.0)

    # fc3: (TB,16)@(16,2) would use <0.1% of an MXU pass -> do it on the VPU/XLU
    w3t = w3t_ref[...].astype(jnp.float32)
    l0 = jnp.sum(h2 * w3t[0:1, :], axis=-1, keepdims=True)   # (TB, 1)
    l1 = jnp.sum(h2 * w3t[1:2, :], axis=-1, keepdims=True)   # (TB, 1)
    logits = jnp.concatenate([l0, l1], axis=-1) + b3_ref[...]  # (TB, 2)

    # softmax over dim=1 (classes), numerically stabilized; exact reciprocal
    # (approx=True would violate the 1e-5 tolerances checked below).
    m = jnp.max(logits, axis=-1, keepdims=True)
    e = jnp.exp(logits - m)
    denom = jnp.sum(e, axis=-1, keepdims=True)
    o_ref[...] = (e * pl.reciprocal(denom, approx=False)).astype(o_ref.dtype)


def attacker_network(x, params, *, block_rows=1024, use_bf16=False):
    """x: (batch, blocksize*3) float32. Returns (batch, 2) softmax probabilities.

    block_rows: rows per grid step (large tiles -> near-roofline HBM streaming
                of x/out; weights stay VMEM-resident either way).
    use_bf16:   cast x / w1 / w2 to bf16 for the MXU (v6e/v7x fast path);
                accumulation and all elementwise math remain f32 (v5e-safe).
    """
    w1, b1, w2, b2, w3t, b3 = params
    batch, d_in = x.shape
    d_h1 = w1.shape[1]
    d_h2 = w2.shape[1]
    n_out = w3t.shape[0]

    if use_bf16:
        x = x.astype(jnp.bfloat16)
        w1 = w1.astype(jnp.bfloat16)
        w2 = w2.astype(jnp.bfloat16)

    # Batch tile: multiple of 8 sublanes; pad the batch to a whole number of tiles.
    tb = _round_up(min(block_rows, batch), 8)
    padded = _round_up(batch, tb)
    if padded != batch:
        x = jnp.pad(x, ((0, padded - batch), (0, 0)))
    grid = (padded // tb,)

    def resident(shape):
        # Constant index_map -> block never changes -> stays VMEM-resident.
        return pl.BlockSpec(shape, lambda i: (0, 0))

    out = pl.pallas_call(
        attacker_kernel,
        out_shape=jax.ShapeDtypeStruct((padded, n_out), jnp.float32),
        grid=grid,
        in_specs=[
            pl.BlockSpec((tb, d_in), lambda i: (i, 0)),  # x: streamed per batch tile
            resident((d_in, d_h1)),                      # fc1 weight
            resident((1, d_h1)),                         # fc1 bias
            resident((d_h1, d_h2)),                      # fc2 weight
            resident((1, d_h2)),                         # fc2 bias
            resident((n_out, d_h2)),                     # fc3 weight (out, in)
            resident((1, n_out)),                        # fc3 bias
        ],
        out_specs=pl.BlockSpec((tb, n_out), lambda i: (i, 0)),
        compiler_params=pltpu.CompilerParams(
            dimension_semantics=("parallel",),  # v7x: shard batch tiles across both TCs
        ),
    )(x, w1, b1, w2, b2, w3t, b3)
    return out[:batch]


def init_params(blocksize, key):
    """Deterministic synthetic weights with the shapes implied by __init__.

    fc1: (blocksize*3) -> (blocksize*6)
    fc2: (blocksize*6) -> (blocksize)
    fc3: (blocksize)   -> 2
    fc1/fc2 stored as (in, out) so the kernel computes x @ W + b (same math as
    nn.Linear); fc3 stored transposed (out, in) for the VPU lane-reduction path.
    Biases kept 2-D (1, out) for TPU-friendly broadcasting.
    """
    d_in, d_h1, d_h2, d_out = blocksize * 3, blocksize * 6, blocksize, 2
    k1, k2, k3, k4, k5, k6 = jax.random.split(key, 6)
    w1 = jax.random.normal(k1, (d_in, d_h1), jnp.float32) * (1.0 / jnp.sqrt(d_in))
    b1 = jax.random.normal(k2, (1, d_h1), jnp.float32) * 0.01
    w2 = jax.random.normal(k3, (d_h1, d_h2), jnp.float32) * (1.0 / jnp.sqrt(d_h1))
    b2 = jax.random.normal(k4, (1, d_h2), jnp.float32) * 0.01
    w3t = jax.random.normal(k5, (d_out, d_h2), jnp.float32) * (1.0 / jnp.sqrt(d_h2))
    b3 = jax.random.normal(k6, (1, d_out), jnp.float32) * 0.01
    return (w1, b1, w2, b2, w3t, b3)


def reference_forward(x, params):
    """Pure-JAX f32 reference matching the PyTorch forward exactly."""
    w1, b1, w2, b2, w3t, b3 = params
    h1 = jnp.maximum(x @ w1 + b1, 0.0)
    h2 = jnp.maximum(h1 @ w2 + b2, 0.0)
    logits = h2 @ w3t.T + b3
    return jax.nn.softmax(logits, axis=1)


if __name__ == "__main__":
    blocksize = 16
    key = jax.random.PRNGKey(0)
    kx, kp = jax.random.split(key)
    params = init_params(blocksize, kp)

    # Case 1: tiny batch, single grid step (f32 everywhere).
    x8 = jax.random.normal(kx, (8, blocksize * 3), jnp.float32)
    out8 = jax.block_until_ready(attacker_network(x8, params))
    ref8 = reference_forward(x8, params)
    assert out8.shape == (8, 2)
    assert jnp.allclose(out8, ref8, atol=1e-5, rtol=1e-5), "f32 mismatch vs reference"
    assert jnp.allclose(jnp.sum(out8, axis=1), 1.0, atol=1e-5), "softmax rows must sum to 1"

    # Case 2: non-multiple batch with a small tile -> multi-step grid + row padding.
    x20 = jax.random.normal(jax.random.fold_in(kx, 1), (20, blocksize * 3), jnp.float32)
    out20 = jax.block_until_ready(attacker_network(x20, params, block_rows=8))
    ref20 = reference_forward(x20, params)
    assert out20.shape == (20, 2)
    assert jnp.allclose(out20, ref20, atol=1e-5, rtol=1e-5), "tiled f32 mismatch vs reference"

    # Case 3: bf16 MXU operands (v6e/v7x fast path), f32 accumulate/elementwise.
    outb = jax.block_until_ready(attacker_network(x20, params, block_rows=8, use_bf16=True))
    assert outb.shape == (20, 2)
    assert jnp.allclose(outb, ref20, atol=5e-2), "bf16 path deviates too much"
    assert jnp.allclose(jnp.sum(outb, axis=1), 1.0, atol=1e-3), "bf16 softmax rows must sum to 1"

    print("KERNEL_OK")
</pallas_src>

<mosaic_0001>
module attributes {stable_mosaic.version = 11 : i64} {
  func.func @attacker_kernel(%arg0: i32, %arg1: memref<8x48xf32, #tpu.memory_space<vmem>>, %arg2: memref<48x96xf32, #tpu.memory_space<vmem>>, %arg3: memref<1x96xf32, #tpu.memory_space<vmem>>, %arg4: memref<96x16xf32, #tpu.memory_space<vmem>>, %arg5: memref<1x16xf32, #tpu.memory_space<vmem>>, %arg6: memref<2x16xf32, #tpu.memory_space<vmem>>, %arg7: memref<1x2xf32, #tpu.memory_space<vmem>>, %arg8: memref<8x2xf32, #tpu.memory_space<vmem>>) attributes {dimension_semantics = [#tpu.dimension_semantics<parallel>], iteration_bounds = array<i64: 1>, scalar_prefetch = 0 : i64, scratch_operands = 0 : i64, tpu.core_type = #tpu.core_type<tc>, window_params = [{transform_indices = @transform_0, window_bounds = array<i64: 8, 48>}, {pipeline_mode = #tpu.pipeline_mode<synchronous>, transform_indices = @transform_1, window_bounds = array<i64: 48, 96>}, {pipeline_mode = #tpu.pipeline_mode<synchronous>, transform_indices = @transform_2, window_bounds = array<i64: 1, 96>}, {pipeline_mode = #tpu.pipeline_mode<synchronous>, transform_indices = @transform_3, window_bounds = array<i64: 96, 16>}, {pipeline_mode = #tpu.pipeline_mode<synchronous>, transform_indices = @transform_4, window_bounds = array<i64: 1, 16>}, {pipeline_mode = #tpu.pipeline_mode<synchronous>, transform_indices = @transform_5, window_bounds = array<i64: 2, 16>}, {pipeline_mode = #tpu.pipeline_mode<synchronous>, transform_indices = @transform_6, window_bounds = array<i64: 1, 2>}, {transform_indices = @transform_7, window_bounds = array<i64: 8, 2>}]} {
    %c0 = arith.constant 0 : index
    %c0_0 = arith.constant 0 : index
    %0 = vector.load %arg1[%c0, %c0_0] : memref<8x48xf32, #tpu.memory_space<vmem>>, vector<8x48xf32>
    %c0_1 = arith.constant 0 : index
    %c0_2 = arith.constant 0 : index
    %1 = vector.load %arg2[%c0_1, %c0_2] : memref<48x96xf32, #tpu.memory_space<vmem>>, vector<48x96xf32>
    %cst = arith.constant dense<0.000000e+00> : vector<8x96xf32>
    %2 = tpu.matmul %0, %1, %cst {dimension_numbers = #tpu.dot_dimension_numbers<[1], [0], [0], [1], [0, 0, 1, 1], [], []>} : vector<8x48xf32>, vector<48x96xf32>, vector<8x96xf32> -> vector<8x96xf32>
    %c0_3 = arith.constant 0 : index
    %c0_4 = arith.constant 0 : index
    %3 = vector.load %arg3[%c0_3, %c0_4] : memref<1x96xf32, #tpu.memory_space<vmem>>, vector<1x96xf32>
    %4 = vector.broadcast %3 : vector<1x96xf32> to vector<8x96xf32>
    %5 = arith.addf %2, %4 : vector<8x96xf32>
    %cst_5 = arith.constant 0.000000e+00 : f32
    %6 = vector.broadcast %cst_5 : f32 to vector<8x96xf32>
    %7 = arith.maximumf %5, %6 : vector<8x96xf32>
    %c0_6 = arith.constant 0 : index
    %c0_7 = arith.constant 0 : index
    %8 = vector.load %arg4[%c0_6, %c0_7] : memref<96x16xf32, #tpu.memory_space<vmem>>, vector<96x16xf32>
    %cst_8 = arith.constant dense<0.000000e+00> : vector<8x16xf32>
    %9 = tpu.matmul %7, %8, %cst_8 {dimension_numbers = #tpu.dot_dimension_numbers<[1], [0], [0], [1], [0, 0, 1, 1], [], []>} : vector<8x96xf32>, vector<96x16xf32>, vector<8x16xf32> -> vector<8x16xf32>
    %c0_9 = arith.constant 0 : index
    %c0_10 = arith.constant 0 : index
    %10 = vector.load %arg5[%c0_9, %c0_10] : memref<1x16xf32, #tpu.memory_space<vmem>>, vector<1x16xf32>
    %11 = vector.broadcast %10 : vector<1x16xf32> to vector<8x16xf32>
    %12 = arith.addf %9, %11 : vector<8x16xf32>
    %cst_11 = arith.constant 0.000000e+00 : f32
    %13 = vector.broadcast %cst_11 : f32 to vector<8x16xf32>
    %14 = arith.maximumf %12, %13 : vector<8x16xf32>
    %c0_12 = arith.constant 0 : index
    %c0_13 = arith.constant 0 : index
    %15 = vector.load %arg6[%c0_12, %c0_13] : memref<2x16xf32, #tpu.memory_space<vmem>>, vector<2x16xf32>
    %16 = vector.extract_strided_slice %15 {offsets = [0, 0], sizes = [1, 16], strides = [1, 1]} : vector<2x16xf32> to vector<1x16xf32>
    %17 = vector.broadcast %16 : vector<1x16xf32> to vector<8x16xf32>
    %18 = arith.mulf %14, %17 : vector<8x16xf32>
    %cst_14 = arith.constant dense<0.000000e+00> : vector<8xf32>
    %19 = vector.multi_reduction <add>, %18, %cst_14 [1] : vector<8x16xf32> to vector<8xf32>
    %20 = vector.shape_cast %19 : vector<8xf32> to vector<8x1xf32>
    %21 = vector.extract_strided_slice %15 {offsets = [1, 0], sizes = [1, 16], strides = [1, 1]} : vector<2x16xf32> to vector<1x16xf32>
    %22 = vector.broadcast %21 : vector<1x16xf32> to vector<8x16xf32>
    %23 = arith.mulf %14, %22 : vector<8x16xf32>
    %cst_15 = arith.constant dense<0.000000e+00> : vector<8xf32>
    %24 = vector.multi_reduction <add>, %23, %cst_15 [1] : vector<8x16xf32> to vector<8xf32>
    %25 = vector.shape_cast %24 : vector<8xf32> to vector<8x1xf32>
    %26 = tpu.concatenate %20, %25 in 1 : vector<8x1xf32>, vector<8x1xf32> -> vector<8x2xf32>
    %c0_16 = arith.constant 0 : index
    %c0_17 = arith.constant 0 : index
    %27 = vector.load %arg7[%c0_16, %c0_17] : memref<1x2xf32, #tpu.memory_space<vmem>>, vector<1x2xf32>
    %28 = vector.broadcast %27 : vector<1x2xf32> to vector<8x2xf32>
    %29 = arith.addf %26, %28 : vector<8x2xf32>
    %cst_18 = arith.constant dense<0xFF800000> : vector<8xf32>
    %30 = vector.multi_reduction <maximumf>, %29, %cst_18 [1] : vector<8x2xf32> to vector<8xf32>
    %31 = vector.shape_cast %30 : vector<8xf32> to vector<8x1xf32>
    %32 = vector.broadcast %31 : vector<8x1xf32> to vector<8x2xf32>
    %33 = arith.subf %29, %32 : vector<8x2xf32>
    %34 = math.exp %33 : vector<8x2xf32>
    %cst_19 = arith.constant dense<0.000000e+00> : vector<8xf32>
    %35 = vector.multi_reduction <add>, %34, %cst_19 [1] : vector<8x2xf32> to vector<8xf32>
    %36 = vector.shape_cast %35 : vector<8xf32> to vector<8x1xf32>
    %37 = tpu.reciprocal %36 : vector<8x1xf32> -> vector<8x1xf32>
    %38 = vector.broadcast %37 : vector<8x1xf32> to vector<8x2xf32>
    %39 = arith.mulf %34, %38 : vector<8x2xf32>
    %c0_20 = arith.constant 0 : index
    %c0_21 = arith.constant 0 : index
    %40 = vector.load %arg8[%c0_20, %c0_21] : memref<8x2xf32, #tpu.memory_space<vmem>>, vector<8x2xf32>
    tpu.vector_store %arg8[%c0_20, %c0_21], %39 {strides = array<i32>} : memref<8x2xf32, #tpu.memory_space<vmem>>, vector<8x2xf32>,
    return
  }
  func.func @transform_0(%arg0: i32) -> (i32, i32) {
    %c0_i32 = arith.constant 0 : i32
    %c0_i32_0 = arith.constant 0 : i32
    return %arg0, %c0_i32 : i32, i32
  }
  func.func @transform_1(%arg0: i32) -> (i32, i32) {
    %c0_i32 = arith.constant 0 : i32
    %c0_i32_0 = arith.constant 0 : i32
    %c0_i32_1 = arith.constant 0 : i32
    return %c0_i32, %c0_i32_0 : i32, i32
  }
  func.func @transform_2(%arg0: i32) -> (i32, i32) {
    %c0_i32 = arith.constant 0 : i32
    %c0_i32_0 = arith.constant 0 : i32
    %c0_i32_1 = arith.constant 0 : i32
    return %c0_i32, %c0_i32_0 : i32, i32
  }
  func.func @transform_3(%arg0: i32) -> (i32, i32) {
    %c0_i32 = arith.constant 0 : i32
    %c0_i32_0 = arith.constant 0 : i32
    %c0_i32_1 = arith.constant 0 : i32
    return %c0_i32, %c0_i32_0 : i32, i32
  }
  func.func @transform_4(%arg0: i32) -> (i32, i32) {
    %c0_i32 = arith.constant 0 : i32
    %c0_i32_0 = arith.constant 0 : i32
    %c0_i32_1 = arith.constant 0 : i32
    return %c0_i32, %c0_i32_0 : i32, i32
  }
  func.func @transform_5(%arg0: i32) -> (i32, i32) {
    %c0_i32 = arith.constant 0 : i32
    %c0_i32_0 = arith.constant 0 : i32
    %c0_i32_1 = arith.constant 0 : i32
    return %c0_i32, %c0_i32_0 : i32, i32
  }
  func.func @transform_6(%arg0: i32) -> (i32, i32) {
    %c0_i32 = arith.constant 0 : i32
    %c0_i32_0 = arith.constant 0 : i32
    %c0_i32_1 = arith.constant 0 : i32
    return %c0_i32, %c0_i32_0 : i32, i32
  }
  func.func @transform_7(%arg0: i32) -> (i32, i32) {
    %c0_i32 = arith.constant 0 : i32
    %c0_i32_0 = arith.constant 0 : i32
    return %arg0, %c0_i32 : i32, i32
  }
}

</mosaic_0001>

<llo_original>
// kernel: tpu_custom_call.1
$region0: #{tpu_custom_call.1}
  #allocation0 [shape = 'u32[]', space=smem, size = 0x4, offset = 0x4, fixed_abs, tag = 'smem constant byte address 0x4 - core index']
  #allocation1 [shape = 'u32[72,128]{1,0:T(1,128)}', space=vmem, size = 0x9000, scoped, tag = 'internal scratch']
  %s0 = inlined_call_operand.vmem [shape: f32[8,48], index: 0, kind: input, shape index: {}]
  %s1 = inlined_call_operand.vmem [shape: f32[48,96], index: 1, kind: input, shape index: {}]
  %s2 = inlined_call_operand.vmem [shape: f32[1,96], index: 2, kind: input, shape index: {}]
  %s3 = inlined_call_operand.vmem [shape: f32[96,16], index: 3, kind: input, shape index: {}]
  %s4 = inlined_call_operand.vmem [shape: f32[1,16], index: 4, kind: input, shape index: {}]
  %s5 = inlined_call_operand.vmem [shape: f32[2,16], index: 5, kind: input, shape index: {}]
  %s6 = inlined_call_operand.vmem [shape: f32[1,2], index: 6, kind: input, shape index: {}]
  %s7 = inlined_call_operand.vmem [shape: f32[8,2], index: 7, kind: output, shape index: {}]
  %s8 = sld [smem:[#allocation0]]
  $region38: #{tpu_custom_call.1} parent=0
    _
  %s10 = ssub.s32 1, %s8
  %s11 = scalar_select 0, %s10, %s8
  // Predicated region
  $region2: #{tpu_custom_call.1} parent=0 // pred_check
    _
  $region3: #{tpu_custom_call.1} parent=0 // pred_check_branch
    %13 = sbr.rel (0) target = $region5
  $region4: #{tpu_custom_call.1} parent=0 // pred_region
    _
  $region5: #{tpu_custom_call.1} parent=0 // pred_fallthru
    _
  // Predicated region
  $region6: #{tpu_custom_call.1} parent=0 // pred_check
    _
  $region7: #{tpu_custom_call.1} parent=0 // pred_check_branch
    %15 = sbr.rel (0) target = $region9
  $region8: #{tpu_custom_call.1} parent=0 // pred_region
    _
  $region9: #{tpu_custom_call.1} parent=0 // pred_fallthru
    _
  // Predicated region
  $region10: #{tpu_custom_call.1} parent=0 // pred_check
    _
  $region11: #{tpu_custom_call.1} parent=0 // pred_check_branch
    %17 = sbr.rel (0) target = $region13
  $region12: #{tpu_custom_call.1} parent=0 // pred_region
    _
  $region13: #{tpu_custom_call.1} parent=0 // pred_fallthru
    _
  // Predicated region
  $region14: #{tpu_custom_call.1} parent=0 // pred_check
    _
  $region15: #{tpu_custom_call.1} parent=0 // pred_check_branch
    %19 = sbr.rel (0) target = $region17
  $region16: #{tpu_custom_call.1} parent=0 // pred_region
    _
  $region17: #{tpu_custom_call.1} parent=0 // pred_fallthru
    _
  // Predicated region
  $region18: #{tpu_custom_call.1} parent=0 // pred_check
    _
  $region19: #{tpu_custom_call.1} parent=0 // pred_check_branch
    %21 = sbr.rel (0) target = $region21
  $region20: #{tpu_custom_call.1} parent=0 // pred_region
    _
  $region21: #{tpu_custom_call.1} parent=0 // pred_fallthru
    _
  // Predicated region
  $region22: #{tpu_custom_call.1} parent=0 // pred_check
    _
  $region23: #{tpu_custom_call.1} parent=0 // pred_check_branch
    %23 = sbr.rel (0) target = $region25
  $region24: #{tpu_custom_call.1} parent=0 // pred_region
    _
  $region25: #{tpu_custom_call.1} parent=0 // pred_fallthru
    _
  // Predicated region
  $region26: #{tpu_custom_call.1} parent=0 // pred_check
    _
  $region27: #{tpu_custom_call.1} parent=0 // pred_check_branch
    %25 = sbr.rel (0) target = $region29
  $region28: #{tpu_custom_call.1} parent=0 // pred_region
    _
  $region29: #{tpu_custom_call.1} parent=0 // pred_fallthru
    _
  %v26 = vld [vmem:[%s0] sm:$0xff]
  %v27 = vld [vmem:[%s1] sm:$0xff]
  %v28 = vld [vmem:[%s1 + $0x8] sm:$0xff]
  %v29 = vld [vmem:[%s1 + $0x10] sm:$0xff]
  %v30 = vld [vmem:[%s1 + $0x18] sm:$0xff]
  %v31 = vld [vmem:[%s1 + $0x20] sm:$0xff]
  %v32 = vld [vmem:[%s1 + $0x28] sm:$0xff]
  %v33 = vld [vmem:[%s2] sm:$0x1]
  %v35 = vperm.slane %v33, 0
  %vm37 = vcmask 392192
  %v39 = vsel %vm37, %v26, 0
  %41 = vmatpush.msra.mxu0 0.0
  %42 = vmatpush.msra.mxu0 0.0
  %43 = vmatpush.msra.mxu0 0.0
  %44 = vmatpush.msra.mxu0 0.0
  %45 = vmatpush.msra.mxu0 0.0
  %46 = vmatpush.msra.mxu0 0.0
  %47 = vmatpush.msra.mxu0 0.0
  %48 = vmatpush.msra.mxu0 0.0
  %49 = vmatpush.msra.mxu0 0.0
  %50 = vmatpush.msra.mxu0 0.0
  %51 = vmatpush.msra.mxu0 %v32
  %52 = vmatpush.msra.mxu0 %v31
  %53 = vmatpush.msra.mxu0 %v30
  %54 = vmatpush.msra.mxu0 %v29
  %55 = vmatpush.msra.mxu0 %v28
  %56 = vmatpush.msra.mxu0 %v27
  %57 = vmatmul.f32.gmra.mxu0 %v39
  %v58 = vpop.f32.mrf.mxu0
  %v59 = vadd.f32 %v35, %v58
  %60 = vdwg.mxu0
  %v61 = vmax.f32 %v59, 0.0
  %v62 = vld [vmem:[%s3] sm:$0xff]
  %v63 = vld [vmem:[%s3 + $0x8] sm:$0xff]
  %v64 = vld [vmem:[%s3 + $0x10] sm:$0xff]
  %v65 = vld [vmem:[%s3 + $0x18] sm:$0xff]
  %v66 = vld [vmem:[%s3 + $0x20] sm:$0xff]
  %v67 = vld [vmem:[%s3 + $0x28] sm:$0xff]
  %v68 = vld [vmem:[%s3 + $0x30] sm:$0xff]
  %v69 = vld [vmem:[%s3 + $0x38] sm:$0xff]
  %v70 = vld [vmem:[%s3 + $0x40] sm:$0xff]
  %v71 = vld [vmem:[%s3 + $0x48] sm:$0xff]
  %v72 = vld [vmem:[%s3 + $0x50] sm:$0xff]
  %v73 = vld [vmem:[%s3 + $0x58] sm:$0xff]
  %v74 = vld [vmem:[%s4] sm:$0x1]
  %v76 = vperm.slane %v74, 0
  %vm78 = vcmask 785408
  %v80 = vsel %vm78, %v61, 0
  %82 = vmatpush.msra.mxu0 0.0
  %83 = vmatpush.msra.mxu0 0.0
  %84 = vmatpush.msra.mxu0 0.0
  %85 = vmatpush.msra.mxu0 0.0
  %86 = vmatpush.msra.mxu0 %v73
  %87 = vmatpush.msra.mxu0 %v72
  %88 = vmatpush.msra.mxu0 %v71
  %89 = vmatpush.msra.mxu0 %v70
  %90 = vmatpush.msra.mxu0 %v69
  %91 = vmatpush.msra.mxu0 %v68
  %92 = vmatpush.msra.mxu0 %v67
  %93 = vmatpush.msra.mxu0 %v66
  %94 = vmatpush.msra.mxu0 %v65
  %95 = vmatpush.msra.mxu0 %v64
  %96 = vmatpush.msra.mxu0 %v63
  %97 = vmatpush.msra.mxu0 %v62
  %98 = vmatmul.f32.gmra.mxu0 %v80
  %v99 = vpop.f32.mrf.mxu0
  %v100 = vadd.f32 %v76, %v99
  %101 = vdwg.mxu0
  %v102 = vmax.f32 %v100, 0.0
  %v103 = vld [vmem:[%s5] sm:$0x3]
  %v104 = vperm.slane %v103, 0
  %v105 = vmul.f32 %v102, %v104
  %vm106 = vcmask 130048
  %v107 = vsel %vm106, %v105, 0.0
  %108 = vadd.xlane.f32.xlu0 %v107
  %v109 = vpop.xlane.xlu0 %108
  %v110 = vperm.slane %v103, 1
  %v111 = vmul.f32 %v102, %v110
  %v112 = vsel %vm106, %v111, 0.0
  %113 = vadd.xlane.f32.xlu0 %v112
  %v114 = vpop.xlane.xlu0 %113
  %vm115 = vcmask 7168
  %v116 = vsel %vm115, %v109, %v114
  %v117 = vld [vmem:[%s6] sm:$0x1]
  %v119 = vperm.slane %v117, 0
  %v121 = vadd.f32 %v116, %v119
  %vm122 = vcmask 15360
  %v123 = vsel %vm122, %v121, -inf
  %124 = vmax.xlane.f32.xlu0 %v123
  %v125 = vpop.xlane.xlu0 %124
  %v126 = vsub.f32 %v121, %v125
  %v127 = vmul.f32 %v126, 1.442695
  %v128 = vpow.pop %v127
  %v129 = vsel %vm122, %v128, 0.0
  %130 = vadd.xlane.f32.xlu0 %v129
  %v131 = vpop.xlane.xlu0 %130
  %v132 = vrcp.pop %v131
  %v133 = vmul.f32 %v131, %v132
  %v134 = vsub.f32 1.0, %v133
  %v135 = vmul.f32 %v132, %v134
  %v136 = vadd.f32 %v132, %v135
  %vm137 = vweird.f32 %v131
  %vm138 = vweird.f32 %v132
  %vm139 = vmor %vm137, %vm138
  %v140 = vsel %vm139, %v132, %v136
  %v141 = vand.u32 2147483647, %v131
  %vm142 = vcmp.eq.f32.partialorder %v141, 8.507059e+37
  %v143 = vand.u32 %v131, 2147483648
  %v144 = vor.u32 1.1754944e-38, %v143
  %v145 = vsel %vm142, %v144, %v140
  %v146 = vmul.f32 %v128, %v145
  %147 = vst.msk [vmem:[%s7] sm:$0xff] %vm122, %v146
  // Predicated region
  $region30: #{tpu_custom_call.1} parent=0 // pred_check
    _
  $region31: #{tpu_custom_call.1} parent=0 // pred_check_branch
    %149 = sbr.rel (0) target = $region33
  $region32: #{tpu_custom_call.1} parent=0 // pred_region
    _
  $region33: #{tpu_custom_call.1} parent=0 // pred_fallthru
    _
  // Predicated region
  $region34: #{tpu_custom_call.1} parent=0 // pred_check
    _
  $region35: #{tpu_custom_call.1} parent=0 // pred_check_branch
    %151 = sbr.rel (0) target = $region37
  $region36: #{tpu_custom_call.1} parent=0 // pred_region
    _
  $region37: #{tpu_custom_call.1} parent=0 // pred_fallthru
    _

</llo_original>
